<compile_context>
chip_gen: v5e
topology: v5e:2x2
jax: 0.10.0
libtpu: 0.0.40
codegen_flags: <defaults>
</compile_context>

<pallas_src>
import functools

import jax
import jax.numpy as jnp
from jax.experimental import pallas as pl
from jax.experimental.pallas import tpu as pltpu


# ------------------------------ helpers ------------------------------------ #

def _round_up(a: int, m: int) -> int:
    return (a + m - 1) // m * m


_SEG_ALIGN = 16   # packed-weight segment row alignment (covers f32 and bf16 sublane tiling)


# ------------------------------ fused kernel -------------------------------- #

def _make_fused_mlp_kernel(layer_plan, compute_dtype):
    """layer_plan entries (static python ints):
         ('d', w_off, w_rows)                      dense layer
         ('s', wy_off, wy_rows, wz_off, wz_rows)   skip layer (cat([y, z]) @ W)
       Offsets/rows index into the packed (K_total, hidden) weight buffer."""
    n_layers = len(layer_plan)

    def kernel(x_ref, z_ref, w_ref, b_ref, o_ref):
        y = x_ref[...].astype(compute_dtype)     # (tile_n, input_dim)
        z = z_ref[...].astype(compute_dtype)     # (tile_n, skip_dim)
        biases = b_ref[...]                      # (n_layers, hidden) f32, resident

        acc = None
        for li, spec in enumerate(layer_plan):   # unrolled at trace time (small, static)
            if spec[0] == 's':
                _, oy, ky, oz, kz = spec
                # relu(cat([y, z]) @ W + b) == relu(y @ Wy + z @ Wz + b).
                # Split-dot form avoids an unaligned minor-dim concat in-kernel;
                # the MXU is idle at these widths either way.
                acc = jnp.dot(y, w_ref[pl.ds(oy, ky), :],
                              preferred_element_type=jnp.float32)
                acc = acc + jnp.dot(z, w_ref[pl.ds(oz, kz), :],
                                    preferred_element_type=jnp.float32)
            else:
                _, ow, kw = spec
                acc = jnp.dot(y, w_ref[pl.ds(ow, kw), :],
                              preferred_element_type=jnp.float32)
            # Bias + ReLU epilogue in f32 (safe on v5e which lacks a bf16 VPU).
            acc = jnp.maximum(acc + biases[li:li + 1, :], 0.0)
            if li + 1 < n_layers:
                # NOTE: on v5e prefer compute_dtype=f32 (no bf16 VPU; MXU idle at these
                # widths), which makes this recast a no-op and avoids bf16 rounding
                # compounding across layers.
                y = acc.astype(compute_dtype)

        o_ref[...] = acc.astype(o_ref.dtype)

    return kernel


# --------------------------- parameters / prep ------------------------------ #

def init_params(key, n_layers, input_dim, output_dim, skip_dim, hidden_dim,
                input_skips):
    """torch.nn.Linear-style init (uniform +/- 1/sqrt(dimin)); weights stored
    PyTorch-style as (dimout, dimin). `output_dim` is accepted but unused,
    exactly like the PyTorch module."""
    del output_dim
    params = []
    for li in range(n_layers):
        if li == 0:
            dimin, dimout = input_dim, hidden_dim
        elif li in input_skips:
            dimin, dimout = hidden_dim + skip_dim, hidden_dim
        else:
            dimin, dimout = hidden_dim, hidden_dim
        key, kw, kb = jax.random.split(key, 3)
        bound = 1.0 / (dimin ** 0.5)
        w = jax.random.uniform(kw, (dimout, dimin), jnp.float32, -bound, bound)
        b = jax.random.uniform(kb, (dimout,), jnp.float32, -bound, bound)
        params.append((w, b))
    return params


def prepare_params(raw_params, input_skips, compute_dtype=jnp.float32):
    """One-time param prep (NOT per forward).

    Returns (wpack, bpack, layer_plan):
      wpack : (K_total, hidden) in compute_dtype -- weights transposed to
              (dimin, dimout), skip-layer weights pre-split into (Wy, Wz),
              each segment zero-padded to a 16-row boundary and concatenated.
      bpack : (n_layers, hidden) f32 biases (epilogue runs in f32).
      layer_plan : static python metadata consumed by the kernel builder.
    """
    skips = set(input_skips)
    assert 0 not in skips, "layer 0 cannot be a skip layer (matches the PyTorch module)"

    hidden = raw_params[0][0].shape[0]
    segments, plan, biases = [], [], []
    off = 0

    def _add_segment(w_t):  # w_t: (dimin, hidden)
        nonlocal off
        k = w_t.shape[0]
        pad = _round_up(k, _SEG_ALIGN) - k
        seg = jnp.pad(w_t, ((0, pad), (0, 0))) if pad else w_t
        start = off
        segments.append(seg.astype(compute_dtype))
        off += seg.shape[0]
        return start, k

    for li, (w, b) in enumerate(raw_params):
        assert w.shape[0] == hidden, "every layer of this module outputs hidden_dim"
        wt = jnp.transpose(w)                          # (dimin, hidden)
        biases.append(b.astype(jnp.float32))
        if li in skips:
            prev_out = raw_params[li - 1][0].shape[0]  # previous layer dimout (== hidden)
            oy, ky = _add_segment(wt[:prev_out])       # y-part
            oz, kz = _add_segment(wt[prev_out:])       # z-part
            plan.append(('s', oy, ky, oz, kz))
        else:
            ow, kw = _add_segment(wt)
            plan.append(('d', ow, kw))

    wpack = jnp.concatenate(segments, axis=0)
    bpack = jnp.stack(biases, axis=0)
    return wpack, bpack, tuple(plan)


# ------------------------------ forward pass -------------------------------- #

def mlp_with_input_skips_pallas(x, z, wpack, bpack, *, layer_plan,
                                out_dtype=None, tile_n_max=2048):
    """Fused Pallas forward. x: (..., input_dim), z: (..., skip_dim)."""
    lead = x.shape[:-1]
    xf = x.reshape(-1, x.shape[-1])
    zf = z.reshape(-1, z.shape[-1])
    n, din = xf.shape
    dskip = zf.shape[1]
    hidden = wpack.shape[1]
    compute_dtype = wpack.dtype
    out_dtype = jnp.dtype(out_dtype if out_dtype is not None else x.dtype)

    # Row-tile sublane alignment: 8 for 32-bit I/O, 16 for 16-bit, 32 for 8-bit.
    align = 8
    for dt in (xf.dtype, zf.dtype, out_dtype):
        align = max(align, 32 // max(1, jnp.dtype(dt).itemsize))
    # Large row tiles amortize per-grid-step overhead and make DMAs contiguous;
    # keep >= 2 grid steps when N allows so the "parallel" axis can use both
    # v7x TensorCores. No jnp.pad: the ragged last tile is handled by Pallas.
    if n > align:
        target = _round_up(pl.cdiv(n, 2), align)
    else:
        target = _round_up(max(n, 1), align)
    tile_n = max(align, min(_round_up(tile_n_max, align), target))
    grid = (pl.cdiv(n, tile_n),)

    in_specs = [
        pl.BlockSpec((tile_n, din), lambda i: (i, 0)),
        pl.BlockSpec((tile_n, dskip), lambda i: (i, 0)),
        # Packed weights / biases: full blocks with a constant index_map -> Pallas
        # keeps them resident in VMEM across all grid steps (no per-step re-fetch).
        # pl.Buffered(1) would halve their VMEM copies; only relevant for MLPs big
        # enough to pressure v7x's 64 MiB VMEM, so omitted here.
        pl.BlockSpec(wpack.shape, lambda i: (0, 0)),
        pl.BlockSpec(bpack.shape, lambda i: (0, 0)),
    ]
    out_specs = pl.BlockSpec((tile_n, hidden), lambda i: (i, 0))

    # Advisory cost estimate (HBM-bound: bytes dominate).
    flops = 0
    for spec in layer_plan:
        k = (spec[2] + spec[4]) if spec[0] == 's' else spec[2]
        flops += 2 * n * k * hidden
    bytes_accessed = (xf.size * xf.dtype.itemsize
                      + zf.size * zf.dtype.itemsize
                      + n * hidden * out_dtype.itemsize
                      + wpack.size * wpack.dtype.itemsize
                      + bpack.size * bpack.dtype.itemsize)

    # VMEM budget: resident params (conservatively x2 for pipeline bookkeeping)
    # plus double-buffered activation tiles, with headroom; cap v7x-safe (<=48 MiB).
    resident = (wpack.size * wpack.dtype.itemsize
                + bpack.size * bpack.dtype.itemsize)
    tile_bytes = tile_n * (din * xf.dtype.itemsize
                           + dskip * zf.dtype.itemsize
                           + hidden * out_dtype.itemsize)
    vmem_limit = int(min(48 * 2 ** 20,
                         max(8 * 2 ** 20, 4 * (resident + tile_bytes))))

    kernel = _make_fused_mlp_kernel(layer_plan, compute_dtype)

    out = pl.pallas_call(
        kernel,
        out_shape=jax.ShapeDtypeStruct((n, hidden), out_dtype),
        grid=grid,
        in_specs=in_specs,
        out_specs=out_specs,
        compiler_params=pltpu.CompilerParams(
            dimension_semantics=("parallel",),        # shards row tiles on v7x dual-TC
            vmem_limit_bytes=vmem_limit,
        ),
        cost_estimate=pl.CostEstimate(
            flops=flops, transcendentals=0, bytes_accessed=bytes_accessed),
    )(xf, zf, wpack, bpack)

    return out.reshape(*lead, hidden)


# ------------------------------ pure-JAX ref --------------------------------- #

def mlp_with_input_skips_ref(x, z, raw_params, input_skips):
    """Pure-JAX f32 reference matching the PyTorch forward exactly."""
    skips = set(input_skips)
    y = x
    for li, (w, b) in enumerate(raw_params):
        if li in skips:
            y = jnp.concatenate([y, z], axis=-1)
        y = jax.nn.relu(y @ jnp.transpose(w) + b)
    return y


# ----------------------------------- main ------------------------------------ #

if __name__ == "__main__":
    n_layers = 4
    input_dim = 16
    output_dim = 32      # accepted but unused by the module, kept for signature parity
    skip_dim = 16
    hidden_dim = 32
    input_skips = (2,)

    batch, seq = 2, 8

    key = jax.random.PRNGKey(0)
    kx, kz, kp = jax.random.split(key, 3)
    x = jax.random.normal(kx, (batch, seq, input_dim), jnp.float32)
    z = jax.random.normal(kz, (batch, seq, skip_dim), jnp.float32)

    raw_params = init_params(kp, n_layers, input_dim, output_dim, skip_dim,
                             hidden_dim, input_skips)

    ref = jax.block_until_ready(
        mlp_with_input_skips_ref(x, z, raw_params, input_skips))

    # 1) f32 compute, f32 I/O: must match the reference tightly.
    w32, b32, plan = prepare_params(raw_params, input_skips, jnp.float32)
    fwd_f32 = jax.jit(functools.partial(mlp_with_input_skips_pallas,
                                        layer_plan=plan))
    out_f32 = jax.block_until_ready(fwd_f32(x, z, w32, b32))
    assert out_f32.shape == (batch, seq, hidden_dim), out_f32.shape
    assert jnp.allclose(out_f32, ref, atol=1e-5, rtol=1e-5), "f32 mismatch vs reference"

    # 2) bf16 at the I/O boundary + bf16 MXU operands (f32 accumulate, f32 epilogue).
    #    Simulates activations stored in bf16 upstream -> halves HBM bytes of this
    #    memory-bound kernel. Inter-layer activations are re-quantized to bf16, so
    #    rounding compounds across layers -> loose tolerance vs the f32 reference.
    wbf, bbf, plan_bf = prepare_params(raw_params, input_skips, jnp.bfloat16)
    x_bf = x.astype(jnp.bfloat16)
    z_bf = z.astype(jnp.bfloat16)
    fwd_bf16 = jax.jit(functools.partial(mlp_with_input_skips_pallas,
                                         layer_plan=plan_bf))
    out_bf16 = jax.block_until_ready(fwd_bf16(x_bf, z_bf, wbf, bbf))
    assert out_bf16.shape == (batch, seq, hidden_dim), out_bf16.shape
    assert out_bf16.dtype == jnp.bfloat16
    assert jnp.allclose(out_bf16.astype(jnp.float32), ref, atol=1e-1, rtol=1e-1), \
        "bf16 mismatch vs reference"

    print("KERNEL_OK")
</pallas_src>

<mosaic_0001>
module attributes {stable_mosaic.version = 11 : i64} {
  func.func @kernel(%arg0: i32, %arg1: memref<8x16xf32, #tpu.memory_space<vmem>>, %arg2: memref<8x16xf32, #tpu.memory_space<vmem>>, %arg3: memref<128x32xf32, #tpu.memory_space<vmem>>, %arg4: memref<4x32xf32, #tpu.memory_space<vmem>>, %arg5: memref<8x32xf32, #tpu.memory_space<vmem>>) attributes {dimension_semantics = [#tpu.dimension_semantics<parallel>], iteration_bounds = array<i64: 2>, scalar_prefetch = 0 : i64, scratch_operands = 0 : i64, tpu.core_type = #tpu.core_type<tc>, window_params = [{transform_indices = @transform_0, window_bounds = array<i64: 8, 16>}, {transform_indices = @transform_1, window_bounds = array<i64: 8, 16>}, {pipeline_mode = #tpu.pipeline_mode<synchronous>, transform_indices = @transform_2, window_bounds = array<i64: 128, 32>}, {pipeline_mode = #tpu.pipeline_mode<synchronous>, transform_indices = @transform_3, window_bounds = array<i64: 4, 32>}, {transform_indices = @transform_4, window_bounds = array<i64: 8, 32>}]} {
    %c0 = arith.constant 0 : index
    %c0_0 = arith.constant 0 : index
    %0 = vector.load %arg1[%c0, %c0_0] : memref<8x16xf32, #tpu.memory_space<vmem>>, vector<8x16xf32>
    %c0_1 = arith.constant 0 : index
    %c0_2 = arith.constant 0 : index
    %1 = vector.load %arg2[%c0_1, %c0_2] : memref<8x16xf32, #tpu.memory_space<vmem>>, vector<8x16xf32>
    %c0_3 = arith.constant 0 : index
    %c0_4 = arith.constant 0 : index
    %2 = vector.load %arg4[%c0_3, %c0_4] : memref<4x32xf32, #tpu.memory_space<vmem>>, vector<4x32xf32>
    %c0_5 = arith.constant 0 : index
    %c0_6 = arith.constant 0 : index
    %3 = vector.load %arg3[%c0_5, %c0_6] : memref<128x32xf32, #tpu.memory_space<vmem>>, vector<16x32xf32>
    %cst = arith.constant dense<0.000000e+00> : vector<8x32xf32>
    %4 = tpu.matmul %0, %3, %cst {dimension_numbers = #tpu.dot_dimension_numbers<[1], [0], [0], [1], [0, 0, 1, 1], [], []>} : vector<8x16xf32>, vector<16x32xf32>, vector<8x32xf32> -> vector<8x32xf32>
    %5 = vector.extract_strided_slice %2 {offsets = [0, 0], sizes = [1, 32], strides = [1, 1]} : vector<4x32xf32> to vector<1x32xf32>
    %6 = vector.broadcast %5 : vector<1x32xf32> to vector<8x32xf32>
    %7 = arith.addf %4, %6 : vector<8x32xf32>
    %cst_7 = arith.constant 0.000000e+00 : f32
    %8 = vector.broadcast %cst_7 : f32 to vector<8x32xf32>
    %9 = arith.maximumf %7, %8 : vector<8x32xf32>
    %c16 = arith.constant 16 : index
    %c0_8 = arith.constant 0 : index
    %10 = vector.load %arg3[%c16, %c0_8] : memref<128x32xf32, #tpu.memory_space<vmem>>, vector<32x32xf32>
    %cst_9 = arith.constant dense<0.000000e+00> : vector<8x32xf32>
    %11 = tpu.matmul %9, %10, %cst_9 {dimension_numbers = #tpu.dot_dimension_numbers<[1], [0], [0], [1], [0, 0, 1, 1], [], []>} : vector<8x32xf32>, vector<32x32xf32>, vector<8x32xf32> -> vector<8x32xf32>
    %12 = vector.extract_strided_slice %2 {offsets = [1, 0], sizes = [1, 32], strides = [1, 1]} : vector<4x32xf32> to vector<1x32xf32>
    %13 = vector.broadcast %12 : vector<1x32xf32> to vector<8x32xf32>
    %14 = arith.addf %11, %13 : vector<8x32xf32>
    %cst_10 = arith.constant 0.000000e+00 : f32
    %15 = vector.broadcast %cst_10 : f32 to vector<8x32xf32>
    %16 = arith.maximumf %14, %15 : vector<8x32xf32>
    %c48 = arith.constant 48 : index
    %c0_11 = arith.constant 0 : index
    %17 = vector.load %arg3[%c48, %c0_11] : memref<128x32xf32, #tpu.memory_space<vmem>>, vector<32x32xf32>
    %cst_12 = arith.constant dense<0.000000e+00> : vector<8x32xf32>
    %18 = tpu.matmul %16, %17, %cst_12 {dimension_numbers = #tpu.dot_dimension_numbers<[1], [0], [0], [1], [0, 0, 1, 1], [], []>} : vector<8x32xf32>, vector<32x32xf32>, vector<8x32xf32> -> vector<8x32xf32>
    %c80 = arith.constant 80 : index
    %c0_13 = arith.constant 0 : index
    %19 = vector.load %arg3[%c80, %c0_13] : memref<128x32xf32, #tpu.memory_space<vmem>>, vector<16x32xf32>
    %cst_14 = arith.constant dense<0.000000e+00> : vector<8x32xf32>
    %20 = tpu.matmul %1, %19, %cst_14 {dimension_numbers = #tpu.dot_dimension_numbers<[1], [0], [0], [1], [0, 0, 1, 1], [], []>} : vector<8x16xf32>, vector<16x32xf32>, vector<8x32xf32> -> vector<8x32xf32>
    %21 = arith.addf %18, %20 : vector<8x32xf32>
    %22 = vector.extract_strided_slice %2 {offsets = [2, 0], sizes = [1, 32], strides = [1, 1]} : vector<4x32xf32> to vector<1x32xf32>
    %23 = vector.broadcast %22 : vector<1x32xf32> to vector<8x32xf32>
    %24 = arith.addf %21, %23 : vector<8x32xf32>
    %cst_15 = arith.constant 0.000000e+00 : f32
    %25 = vector.broadcast %cst_15 : f32 to vector<8x32xf32>
    %26 = arith.maximumf %24, %25 : vector<8x32xf32>
    %c96 = arith.constant 96 : index
    %c0_16 = arith.constant 0 : index
    %27 = vector.load %arg3[%c96, %c0_16] : memref<128x32xf32, #tpu.memory_space<vmem>>, vector<32x32xf32>
    %cst_17 = arith.constant dense<0.000000e+00> : vector<8x32xf32>
    %28 = tpu.matmul %26, %27, %cst_17 {dimension_numbers = #tpu.dot_dimension_numbers<[1], [0], [0], [1], [0, 0, 1, 1], [], []>} : vector<8x32xf32>, vector<32x32xf32>, vector<8x32xf32> -> vector<8x32xf32>
    %29 = vector.extract_strided_slice %2 {offsets = [3, 0], sizes = [1, 32], strides = [1, 1]} : vector<4x32xf32> to vector<1x32xf32>
    %30 = vector.broadcast %29 : vector<1x32xf32> to vector<8x32xf32>
    %31 = arith.addf %28, %30 : vector<8x32xf32>
    %cst_18 = arith.constant 0.000000e+00 : f32
    %32 = vector.broadcast %cst_18 : f32 to vector<8x32xf32>
    %33 = arith.maximumf %31, %32 : vector<8x32xf32>
    %c0_19 = arith.constant 0 : index
    %c0_20 = arith.constant 0 : index
    %34 = vector.load %arg5[%c0_19, %c0_20] : memref<8x32xf32, #tpu.memory_space<vmem>>, vector<8x32xf32>
    tpu.vector_store %arg5[%c0_19, %c0_20], %33 {strides = array<i32>} : memref<8x32xf32, #tpu.memory_space<vmem>>, vector<8x32xf32>,
    return
  }
  func.func @transform_0(%arg0: i32) -> (i32, i32) {
    %c0_i32 = arith.constant 0 : i32
    %c0_i32_0 = arith.constant 0 : i32
    return %arg0, %c0_i32 : i32, i32
  }
  func.func @transform_1(%arg0: i32) -> (i32, i32) {
    %c0_i32 = arith.constant 0 : i32
    %c0_i32_0 = arith.constant 0 : i32
    return %arg0, %c0_i32 : i32, i32
  }
  func.func @transform_2(%arg0: i32) -> (i32, i32) {
    %c0_i32 = arith.constant 0 : i32
    %c0_i32_0 = arith.constant 0 : i32
    %c0_i32_1 = arith.constant 0 : i32
    return %c0_i32, %c0_i32_0 : i32, i32
  }
  func.func @transform_3(%arg0: i32) -> (i32, i32) {
    %c0_i32 = arith.constant 0 : i32
    %c0_i32_0 = arith.constant 0 : i32
    %c0_i32_1 = arith.constant 0 : i32
    return %c0_i32, %c0_i32_0 : i32, i32
  }
  func.func @transform_4(%arg0: i32) -> (i32, i32) {
    %c0_i32 = arith.constant 0 : i32
    %c0_i32_0 = arith.constant 0 : i32
    return %arg0, %c0_i32 : i32, i32
  }
}

</mosaic_0001>

<llo_original>
// kernel: mlp_with_input_skips_pallas.1
$region0: #{mlp_with_input_skips_pallas.1}
  #allocation0 [shape = 'u32[]', space=smem, size = 0x4, offset = 0x4, fixed_abs, tag = 'smem constant byte address 0x4 - core index']
  #allocation1 [shape = 'u32[72,128]{1,0:T(1,128)}', space=vmem, size = 0x9000, scoped, tag = 'internal scratch']
  %s0 = inlined_call_operand.vmem [shape: f32[16,16], index: 0, kind: input, shape index: {}]
  %s1 = inlined_call_operand.vmem [shape: f32[16,16], index: 1, kind: input, shape index: {}]
  %s2 = inlined_call_operand.vmem [shape: f32[128,32], index: 2, kind: input, shape index: {}]
  %s3 = inlined_call_operand.vmem [shape: f32[4,32], index: 3, kind: input, shape index: {}]
  %s4 = inlined_call_operand.hbm [shape: f32[16,32], index: 4, kind: output, shape index: {}]
  %s5 = sld [smem:[#allocation0]]
  $region49: #{mlp_with_input_skips_pallas.1} parent=0
    _
  %s7 = ssub.s32 1, %s5
  %s8 = scalar_select 0, %s7, %s5
  $region1: #{mlp_with_input_skips_pallas.1} parent=0
    #allocation2 [shape = 'u8[8192]{0}', space=vmem, size = 0x2000, scoped, tag = 'output window, operand 0']
    #allocation3 [shape = 's32[2]{0}', space=sflag, size = 0x8, scoped, tag = 'scoped memory for mlp_with_input_skips_pallas.1']
    %9 = vsyncpa [#allocation3], 0
    %s10 = scalar_lea.sflag [#allocation3], 1
    %11 = vsyncpa %s10, 0
    loop: start=0, step=1, limit=4
    $region2: #{mlp_with_input_skips_pallas.1} parent=1 // loop_pre_header
      _
    $region3: #{mlp_with_input_skips_pallas.1} parent=1 // loop_header
      %s13 = sphi 0, %s17
      %p14 = scmp.ge.s32.totalorder %s13, 4
      %s23 = sphi 0, %s25
      %s26 = sphi 0, %s23
      %s27 = sphi 0, %s26
      %s43 = sphi 0, %s27
      %s49 = sphi 0, %s51
      %s52 = sphi 0, %s49
      %s53 = sphi 0, %s52
      %s69 = sphi 0, %s53
      %s73 = sphi 0, %s73
      %s75 = sphi 0, %s73
      %s76 = sphi 0, %s75
      %s90 = sphi 0, %s76
      %s94 = sphi 0, %s94
      %s96 = sphi 0, %s94
      %s97 = sphi 0, %s96
      %s111 = sphi 0, %s97
      %s117 = sphi 0, %s119
      %s120 = sphi 0, %s117
      %s121 = sphi 0, %s120
      %s137 = sphi 0, %s121
    $region4: #{mlp_with_input_skips_pallas.1} parent=1 // loop_header_branch
      %16 = sbr.rel (%p14) target = $region8
    $region5: #{mlp_with_input_skips_pallas.1} parent=1 // loop_body
      %s18 = ssub.s32 %s13, 1
      %s19 = ssub.s32 %s13, 2
      %s20 = sadd.s32 %s13, 1
      %s21 = ssub.s32 %s13, %s20
      %p22 = scmp.eq.s32.totalorder %s21, 0
      %s24 = sadd.s32 %s23, 1
      %s25 = scalar_select %p22, %s23, %s24
      %p28 = pneg %p22
      %p29 = scmp.eq.s32.totalorder %s13, 1
      %p30 = por %p28, %p29
      %p31 = scmp.ne.s32.totalorder %s23, %s26
      %p32 = scmp.eq.s32.totalorder %s13, 0
      %p33 = por %p31, %p32
      %p34 = scmp.ne.s32.totalorder %s23, %s26
      %p35 = scmp.eq.s32.totalorder %s18, 1
      %p36 = por %p34, %p35
      %p37 = scmp.ne.s32.totalorder %s26, %s27
      %p38 = scmp.eq.s32.totalorder %s18, 0
      %p39 = por %p37, %p38
      %p40 = scmp.ne.s32.totalorder %s26, %s27
      %p41 = scmp.eq.s32.totalorder %s19, 1
      %p42 = por %p40, %p41
      %p44 = scmp.ne.s32.totalorder %s27, %s43
      %p45 = scmp.eq.s32.totalorder %s19, 0
      %p46 = por %p44, %p45
      %s47 = ssub.s32 %s13, %s20
      %p48 = scmp.eq.s32.totalorder %s47, 0
      %s50 = sadd.s32 %s49, 1
      %s51 = scalar_select %p48, %s49, %s50
      %p54 = pneg %p48
      %p55 = scmp.eq.s32.totalorder %s13, 1
      %p56 = por %p54, %p55
      %p57 = scmp.ne.s32.totalorder %s49, %s52
      %p58 = scmp.eq.s32.totalorder %s13, 0
      %p59 = por %p57, %p58
      %p60 = scmp.ne.s32.totalorder %s49, %s52
      %p61 = scmp.eq.s32.totalorder %s18, 1
      %p62 = por %p60, %p61
      %p63 = scmp.ne.s32.totalorder %s52, %s53
      %p64 = scmp.eq.s32.totalorder %s18, 0
      %p65 = por %p63, %p64
      %p66 = scmp.ne.s32.totalorder %s52, %s53
      %p67 = scmp.eq.s32.totalorder %s19, 1
      %p68 = por %p66, %p67
      %p70 = scmp.ne.s32.totalorder %s53, %s69
      %p71 = scmp.eq.s32.totalorder %s19, 0
      %p72 = por %p70, %p71
      %s74 = sadd.s32 %s73, 1
      %p77 = scmp.eq.s32.totalorder %s13, 1
      %p78 = scmp.ne.s32.totalorder %s73, %s75
      %p79 = scmp.eq.s32.totalorder %s13, 0
      %p80 = por %p78, %p79
      %p81 = scmp.ne.s32.totalorder %s73, %s75
      %p82 = scmp.eq.s32.totalorder %s18, 1
      %p83 = por %p81, %p82
      %p84 = scmp.ne.s32.totalorder %s75, %s76
      %p85 = scmp.eq.s32.totalorder %s18, 0
      %p86 = por %p84, %p85
      %p87 = scmp.ne.s32.totalorder %s75, %s76
      %p88 = scmp.eq.s32.totalorder %s19, 1
      %p89 = por %p87, %p88
      %p91 = scmp.ne.s32.totalorder %s76, %s90
      %p92 = scmp.eq.s32.totalorder %s19, 0
      %p93 = por %p91, %p92
      %s95 = sadd.s32 %s94, 1
      %p98 = scmp.eq.s32.totalorder %s13, 1
      %p99 = scmp.ne.s32.totalorder %s94, %s96
      %p100 = scmp.eq.s32.totalorder %s13, 0
      %p101 = por %p99, %p100
      %p102 = scmp.ne.s32.totalorder %s94, %s96
      %p103 = scmp.eq.s32.totalorder %s18, 1
      %p104 = por %p102, %p103
      %p105 = scmp.ne.s32.totalorder %s96, %s97
      %p106 = scmp.eq.s32.totalorder %s18, 0
      %p107 = por %p105, %p106
      %p108 = scmp.ne.s32.totalorder %s96, %s97
      %p109 = scmp.eq.s32.totalorder %s19, 1
      %p110 = por %p108, %p109
      %p112 = scmp.ne.s32.totalorder %s97, %s111
      %p113 = scmp.eq.s32.totalorder %s19, 0
      %p114 = por %p112, %p113
      %s115 = ssub.s32 %s13, %s20
      %p116 = scmp.eq.s32.totalorder %s115, 0
      %s118 = sadd.s32 %s117, 1
      %s119 = scalar_select %p116, %s117, %s118
      %p122 = pneg %p116
      %p123 = scmp.eq.s32.totalorder %s13, 1
      %p124 = por %p122, %p123
      %p125 = scmp.ne.s32.totalorder %s117, %s120
      %p126 = scmp.eq.s32.totalorder %s13, 0
      %p127 = por %p125, %p126
      %p128 = scmp.ne.s32.totalorder %s117, %s120
      %p129 = scmp.eq.s32.totalorder %s18, 1
      %p130 = por %p128, %p129
      %p131 = scmp.ne.s32.totalorder %s120, %s121
      %p132 = scmp.eq.s32.totalorder %s18, 0
      %p133 = por %p131, %p132
      %p134 = scmp.ne.s32.totalorder %s120, %s121
      %p135 = scmp.eq.s32.totalorder %s19, 1
      %p136 = por %p134, %p135
      %p138 = scmp.ne.s32.totalorder %s121, %s137
      %p139 = scmp.eq.s32.totalorder %s19, 0
      %p140 = por %p138, %p139
      %p141 = scmp.le.s32.totalorder 1, %s13
      %p142 = scmp.lt.s32.totalorder %s13, 3
      %p143 = pnand %p141, %p142
      %p144 = pneg %p143
      // Predicated region
      $region9: #{mlp_with_input_skips_pallas.1} parent=5 // pred_check
        _
      $region10: #{mlp_with_input_skips_pallas.1} parent=5 // pred_check_branch
        %146 = sbr.rel (%p143) target = $region12
      $region11: #{mlp_with_input_skips_pallas.1} parent=5 // pred_region
        %s147 = ssub.s32 %s13, 1
        // Predicated region
        $region13: #{mlp_with_input_skips_pallas.1} parent=11 // pred_check
          %p148 = pneg %p86
        $region14: #{mlp_with_input_skips_pallas.1} parent=11 // pred_check_branch
          %150 = sbr.rel (%p148) target = $region16
        $region15: #{mlp_with_input_skips_pallas.1} parent=11 // pred_region
          _
        $region16: #{mlp_with_input_skips_pallas.1} parent=11 // pred_fallthru
          _
        // Predicated region
        $region17: #{mlp_with_input_skips_pallas.1} parent=11 // pred_check
          %p151 = pneg %p107
        $region18: #{mlp_with_input_skips_pallas.1} parent=11 // pred_check_branch
          %153 = sbr.rel (%p151) target = $region20
        $region19: #{mlp_with_input_skips_pallas.1} parent=11 // pred_region
          _
        $region20: #{mlp_with_input_skips_pallas.1} parent=11 // pred_fallthru
          _
      $region12: #{mlp_with_input_skips_pallas.1} parent=5 // pred_fallthru
        _
      %p154 = scmp.lt.s32.totalorder %s13, 2
      // Predicated region
      $region21: #{mlp_with_input_skips_pallas.1} parent=5 // pred_check
        %p155 = pneg %p154
      $region22: #{mlp_with_input_skips_pallas.1} parent=5 // pred_check_branch
        %157 = sbr.rel (%p155) target = $region24
      $region23: #{mlp_with_input_skips_pallas.1} parent=5 // pred_region
        // Predicated region
        $region25: #{mlp_with_input_skips_pallas.1} parent=23 // pred_check
          %p158 = pneg %p33
        $region26: #{mlp_with_input_skips_pallas.1} parent=23 // pred_check_branch
          %160 = sbr.rel (%p158) target = $region28
        $region27: #{mlp_with_input_skips_pallas.1} parent=23 // pred_region
          %p161 = scmp.lt.s32.totalorder %s13, 1
          %s162 = scalar_select %p161, %s13, 1
          %s163 = smul.addr %s162, 8
          %s164 = scalar_lea.vmem %s0, %s163
        $region28: #{mlp_with_input_skips_pallas.1} parent=23 // pred_fallthru
          _
        // Predicated region
        $region29: #{mlp_with_input_skips_pallas.1} parent=23 // pred_check
          %p165 = pneg %p59
        $region30: #{mlp_with_input_skips_pallas.1} parent=23 // pred_check_branch
          %167 = sbr.rel (%p165) target = $region32
        $region31: #{mlp_with_input_skips_pallas.1} parent=23 // pred_region
          %p168 = scmp.lt.s32.totalorder %s13, 1
          %s169 = scalar_select %p168, %s13, 1
          %s170 = smul.addr %s169, 8
          %s171 = scalar_lea.vmem %s1, %s170
        $region32: #{mlp_with_input_skips_pallas.1} parent=23 // pred_fallthru
          _
      $region24: #{mlp_with_input_skips_pallas.1} parent=5 // pred_fallthru
        _
      %p172 = scmp.le.s32.totalorder 1, %s13
      %p173 = scmp.lt.s32.totalorder %s13, 3
      %p174 = pnand %p172, %p173
      %p175 = pneg %p174
      // Predicated region
      $region33: #{mlp_with_input_skips_pallas.1} parent=5 // pred_check
        _
      $region34: #{mlp_with_input_skips_pallas.1} parent=5 // pred_check_branch
        %177 = sbr.rel (%p174) target = $region36
      $region35: #{mlp_with_input_skips_pallas.1} parent=5 // pred_region
        %s178 = ssub.s32 %s13, 1
        %p179 = scmp.lt.s32.totalorder %s18, 1
        %s180 = scalar_select %p179, %s18, 1
        %s181 = smul.addr %s180, 8
        %s182 = scalar_lea.vmem %s0, %s181
        %p183 = pneg %p39
        %p184 = pneg %p36
        %p185 = scmp.lt.s32.totalorder %s18, 1
        %s186 = scalar_select %p185, %s18, 1
        %s187 = smul.addr %s186, 8
        %s188 = scalar_lea.vmem %s1, %s187
        %p189 = pneg %p65
        %p190 = pneg %p62
        %p191 = pneg %p86
        %p192 = pneg %p83
        %p193 = pneg %p107
        %p194 = pneg %p104
        %p195 = pneg %p133
        %p196 = pneg %p130
        %s197 = sand.u32 %s120, 1
        %s198 = scalar_lea.sflag [#allocation3], %s197
        %s199 = sand.u32 %s120, 1
        %s200 = smul.addr %s199, 8
        %s201 = scalar_lea.vmem [#allocation2], %s200
        %p202 = scmp.lt.s32.totalorder %s18, 1
        %s203 = scalar_select %p202, %s18, 1
        %s204 = smul.addr %s203, 8
        %s205 = scalar_lea.vmem %s0, %s204
        %p206 = scmp.lt.s32.totalorder %s18, 1
        %s207 = scalar_select %p206, %s18, 1
        %s208 = smul.addr %s207, 8
        %s209 = scalar_lea.vmem %s1, %s208
        %v210 = vld [vmem:[%s205] sm:$0xff]
        %v211 = vld [vmem:[%s209] sm:$0xff]
        %v212 = vld [vmem:[%s3] sm:$0xf]
        %v213 = vld [vmem:[%s2] sm:$0xff]
        %v214 = vld [vmem:[%s2 + $0x8] sm:$0xff]
        %v215 = vperm.slane %v212, 0
        %vm216 = vcmask 130048
        %v218 = vsel %vm216, %v210, 0
        %220 = vmatpush.msra.mxu0 0.0
        %221 = vmatpush.msra.mxu0 0.0
        %222 = vmatpush.msra.mxu0 0.0
        %223 = vmatpush.msra.mxu0 0.0
        %224 = vmatpush.msra.mxu0 0.0
        %225 = vmatpush.msra.mxu0 0.0
        %226 = vmatpush.msra.mxu0 0.0
        %227 = vmatpush.msra.mxu0 0.0
        %228 = vmatpush.msra.mxu0 0.0
        %229 = vmatpush.msra.mxu0 0.0
        %230 = vmatpush.msra.mxu0 0.0
        %231 = vmatpush.msra.mxu0 0.0
        %232 = vmatpush.msra.mxu0 0.0
        %233 = vmatpush.msra.mxu0 0.0
        %234 = vmatpush.msra.mxu0 %v214
        %235 = vmatpush.msra.mxu0 %v213
        %236 = vmatmul.f32.gmra.mxu0 %v218
        %v237 = vpop.f32.mrf.mxu0
        %v238 = vadd.f32 %v215, %v237
        %239 = vdwg.mxu0
        %v240 = vmax.f32 %v238, 0.0
        %v241 = vld [vmem:[%s2 + $0x10] sm:$0xff]
        %v242 = vld [vmem:[%s2 + $0x18] sm:$0xff]
        %v243 = vld [vmem:[%s2 + $0x20] sm:$0xff]
        %v244 = vld [vmem:[%s2 + $0x28] sm:$0xff]
        %v245 = vperm.slane %v212, 1
        %vm246 = vcmask 261120
        %v248 = vsel %vm246, %v240, 0
        %250 = vmatpush.msra.mxu0 0.0
        %251 = vmatpush.msra.mxu0 0.0
        %252 = vmatpush.msra.mxu0 0.0
        %253 = vmatpush.msra.mxu0 0.0
        %254 = vmatpush.msra.mxu0 0.0
        %255 = vmatpush.msra.mxu0 0.0
        %256 = vmatpush.msra.mxu0 0.0
        %257 = vmatpush.msra.mxu0 0.0
        %258 = vmatpush.msra.mxu0 0.0
        %259 = vmatpush.msra.mxu0 0.0
        %260 = vmatpush.msra.mxu0 0.0
        %261 = vmatpush.msra.mxu0 0.0
        %262 = vmatpush.msra.mxu0 %v244
        %263 = vmatpush.msra.mxu0 %v243
        %264 = vmatpush.msra.mxu0 %v242
        %265 = vmatpush.msra.mxu0 %v241
        %266 = vmatmul.f32.gmra.mxu0 %v248
        %v267 = vpop.f32.mrf.mxu0
        %v268 = vadd.f32 %v245, %v267
        %269 = vdwg.mxu0
        %v270 = vmax.f32 %v268, 0.0
        %v271 = vld [vmem:[%s2 + $0x30] sm:$0xff]
        %v272 = vld [vmem:[%s2 + $0x38] sm:$0xff]
        %v273 = vld [vmem:[%s2 + $0x40] sm:$0xff]
        %v274 = vld [vmem:[%s2 + $0x48] sm:$0xff]
        %v275 = vld [vmem:[%s2 + $0x50] sm:$0xff]
        %v276 = vld [vmem:[%s2 + $0x58] sm:$0xff]
        %v278 = vsel %vm216, %v211, 0
        %280 = vmatpush.msra.mxu0 0.0
        %281 = vmatpush.msra.mxu0 0.0
        %282 = vmatpush.msra.mxu0 0.0
        %283 = vmatpush.msra.mxu0 0.0
        %284 = vmatpush.msra.mxu0 0.0
        %285 = vmatpush.msra.mxu0 0.0
        %286 = vmatpush.msra.mxu0 0.0
        %287 = vmatpush.msra.mxu0 0.0
        %288 = vmatpush.msra.mxu0 0.0
        %289 = vmatpush.msra.mxu0 0.0
        %290 = vmatpush.msra.mxu0 0.0
        %291 = vmatpush.msra.mxu0 0.0
        %292 = vmatpush.msra.mxu0 0.0
        %293 = vmatpush.msra.mxu0 0.0
        %294 = vmatpush.msra.mxu0 %v276
        %295 = vmatpush.msra.mxu0 %v275
        %296 = vmatmul.f32.gmra.mxu0 %v278
        %v297 = vpop.f32.mrf.mxu0
        %v298 = vadd.f32 0.0, %v297
        %299 = vdwg.mxu0
        %v301 = vsel %vm246, %v270, 0
        %303 = vmatpush.msra.mxu0 0.0
        %304 = vmatpush.msra.mxu0 0.0
        %305 = vmatpush.msra.mxu0 0.0
        %306 = vmatpush.msra.mxu0 0.0
        %307 = vmatpush.msra.mxu0 0.0
        %308 = vmatpush.msra.mxu0 0.0
        %309 = vmatpush.msra.mxu0 0.0
        %310 = vmatpush.msra.mxu0 0.0
        %311 = vmatpush.msra.mxu0 0.0
        %312 = vmatpush.msra.mxu0 0.0
        %313 = vmatpush.msra.mxu0 0.0
        %314 = vmatpush.msra.mxu0 0.0
        %315 = vmatpush.msra.mxu0 %v274
        %316 = vmatpush.msra.mxu0 %v273
        %317 = vmatpush.msra.mxu0 %v272
        %318 = vmatpush.msra.mxu0 %v271
        %319 = vmatmul.f32.gmra.mxu0 %v301
        %v320 = vpop.f32.mrf.mxu0
        %v321 = vadd.f32 %v298, %v320
        %322 = vdwg.mxu0
        %v323 = vperm.slane %v212, 2
        %v324 = vadd.f32 %v321, %v323
        %v325 = vmax.f32 %v324, 0.0
        %v326 = vld [vmem:[%s2 + $0x60] sm:$0xff]
        %v327 = vld [vmem:[%s2 + $0x68] sm:$0xff]
        %v328 = vld [vmem:[%s2 + $0x70] sm:$0xff]
        %v329 = vld [vmem:[%s2 + $0x78] sm:$0xff]
        %v330 = vperm.slane %v212, 3
        %v332 = vsel %vm246, %v325, 0
        %334 = vmatpush.msra.mxu0 0.0
        %335 = vmatpush.msra.mxu0 0.0
        %336 = vmatpush.msra.mxu0 0.0
        %337 = vmatpush.msra.mxu0 0.0
        %338 = vmatpush.msra.mxu0 0.0
        %339 = vmatpush.msra.mxu0 0.0
        %340 = vmatpush.msra.mxu0 0.0
        %341 = vmatpush.msra.mxu0 0.0
        %342 = vmatpush.msra.mxu0 0.0
        %343 = vmatpush.msra.mxu0 0.0
        %344 = vmatpush.msra.mxu0 0.0
        %345 = vmatpush.msra.mxu0 0.0
        %346 = vmatpush.msra.mxu0 %v329
        %347 = vmatpush.msra.mxu0 %v328
        %348 = vmatpush.msra.mxu0 %v327
        %349 = vmatpush.msra.mxu0 %v326
        %350 = vmatmul.f32.gmra.mxu0 %v332
        %v351 = vpop.f32.mrf.mxu0
        %v352 = vadd.f32 %v330, %v351
        %353 = vdwg.mxu0
        %v354 = vmax.f32 %v352, 0.0
        %355 = vst.msk [vmem:[%s201] sm:$0xff] %vm246, %v354
        %s356 = sand.u32 %s120, 1
        %s357 = scalar_lea.sflag [#allocation3], %s356
        %s358 = sand.u32 %s120, 1
        %s359 = smul.addr %s358, 8
        %s360 = scalar_lea.vmem [#allocation2], %s359
        // Predicated region
        $region37: #{mlp_with_input_skips_pallas.1} parent=35 // pred_check
          %p361 = pneg %p130
        $region38: #{mlp_with_input_skips_pallas.1} parent=35 // pred_check_branch
          %363 = sbr.rel (%p361) target = $region40
        $region39: #{mlp_with_input_skips_pallas.1} parent=35 // pred_region
          %365 = vsyncadd %s357, 0
          %s366 = smul.addr %s18, 8
          %s367 = scalar_lea.hbm %s4, %s366
          %s369 = sshll.u32 %s360, 4
          %s370 = int_to_ptr.vmem [resolvable:$true] %s369
          %s371 = sshll.u32 %s367, 4
          %s372 = int_to_ptr.hbm [resolvable:$true] %s371
          %374 = dma.vmem_to_hbm [thread:$0]  %s370, 128, %s372, %s357
        $region40: #{mlp_with_input_skips_pallas.1} parent=35 // pred_fallthru
          _
      $region36: #{mlp_with_input_skips_pallas.1} parent=5 // pred_fallthru
        _
      %p375 = scmp.le.s32.totalorder 2, %s13
      // Predicated region
      $region41: #{mlp_with_input_skips_pallas.1} parent=5 // pred_check
        %p376 = pneg %p375
      $region42: #{mlp_with_input_skips_pallas.1} parent=5 // pred_check_branch
        %378 = sbr.rel (%p376) target = $region44
      $region43: #{mlp_with_input_skips_pallas.1} parent=5 // pred_region
        %s379 = ssub.s32 %s13, 2
        // Predicated region
        $region45: #{mlp_with_input_skips_pallas.1} parent=43 // pred_check
          %p380 = pneg %p136
        $region46: #{mlp_with_input_skips_pallas.1} parent=43 // pred_check_branch
          %382 = sbr.rel (%p380) target = $region48
        $region47: #{mlp_with_input_skips_pallas.1} parent=43 // pred_region
          %s383 = sand.u32 %s121, 1
          %s384 = scalar_lea.sflag [#allocation3], %s383
          %s385 = sand.u32 %s121, 1
          %s386 = smul.addr %s385, 8
          %s387 = scalar_lea.vmem [#allocation2], %s386
          %389 = dma.done %s384, 128
        $region48: #{mlp_with_input_skips_pallas.1} parent=43 // pred_fallthru
          _
      $region44: #{mlp_with_input_skips_pallas.1} parent=5 // pred_fallthru
        _
    $region6: #{mlp_with_input_skips_pallas.1} parent=1 // loop_footer
      %s17 = sadd.s32 1, %s13
    $region7: #{mlp_with_input_skips_pallas.1} parent=1 // loop_footer_branch
      %12 = sbr.rel target = $region3
    $region8: #{mlp_with_input_skips_pallas.1} parent=1 // loop_exit
      _
    %390 = vsyncpa [#allocation3], 1
    %s391 = scalar_lea.sflag [#allocation3], 1
    %392 = vsyncpa %s391, 1

</llo_original>
